<compile_context>
chip_gen: v7x
topology: tpu7x:2x2x1
jax: 0.10.0
libtpu: 0.0.40
codegen_flags: <defaults>
</compile_context>

<pallas_src>
import functools

import jax
import jax.numpy as jnp
from jax.experimental import pallas as pl
from jax.experimental.pallas import tpu as pltpu


# ---------------------------------------------------------------------------
# Schedules (pure Python, identical to the PyTorch helper)
# ---------------------------------------------------------------------------
def get_linear_schedule(start, stop, steps):
    slope = (stop - start) / float(steps)
    upper = stop if slope >= 0.0 else start
    lower = start if slope >= 0.0 else stop

    def _sched(step):
        return max(min(start + step * slope, upper), lower)

    return _sched


# ---------------------------------------------------------------------------
# Pallas kernel: fused ensemble MLP -> sigmoid -> mean/var over E -> mask
# ---------------------------------------------------------------------------
def _adv_filter_kernel(ensemble_size, sched_ref,
                       s_ref, a_ref, w1_ref, b1_ref, w2bd_ref, b2_ref,
                       mask_ref):
    # Splice state/action into one (Bt, D) tile (both already in VMEM) and run
    # the first layer for ALL ensemble members as ONE lane-full matmul:
    # (Bt, D) @ (D, E*H).
    # NOTE: default MXU precision; pass precision=jax.lax.Precision.HIGHEST to
    # the dots if bit-parity at the min_conf/max_unct thresholds is required.
    x = jnp.concatenate([s_ref[...], a_ref[...]], axis=1)               # (Bt, D)
    h = jnp.dot(x, w1_ref[...], preferred_element_type=jnp.float32)
    h = jnp.maximum(h + b1_ref[...], 0.0)                               # (Bt, E*H)

    # Second layer as one block-diagonal matmul: (Bt, E*H) @ (E*H, E) -> (Bt, E).
    logits = jnp.dot(h, w2bd_ref[...], preferred_element_type=jnp.float32)
    preds = jax.nn.sigmoid(logits + b2_ref[...])                        # (Bt, E)

    # Ensemble statistics (two-pass, numerically stable; ddof=1 like torch.std).
    inv_e = 1.0 / float(ensemble_size)
    mean = jnp.sum(preds, axis=1, keepdims=True) * inv_e                # (Bt, 1)
    dev = preds - mean
    var = jnp.sum(dev * dev, axis=1, keepdims=True) * (
        1.0 / float(ensemble_size - 1))                                 # (Bt, 1)

    min_conf = sched_ref[0]
    max_unct_sq = sched_ref[1]                                          # max_unct ** 2
    m = jnp.where(mean >= min_conf, 1.0, 0.0)
    m = jnp.where(var >= max_unct_sq, 0.0, m)
    mask_ref[...] = m.astype(mask_ref.dtype)


# ---------------------------------------------------------------------------
# One-time parameter preparation (HOISTED out of the per-step hot path)
# ---------------------------------------------------------------------------
def prepare_adv_filter_params(params):
    """Re-layout ensemble weights for the kernel.  Call ONCE per param update."""
    W1, b1, W2, b2 = params                    # (E,D,H) (E,1,H) (E,H,1) (E,1,1)
    E, D, H = W1.shape
    assert E >= 2, "unbiased std (ddof=1) requires ensemble_size >= 2"
    EH = E * H

    # W1_flat column e*H + h == W1[e, :, h]
    W1_flat = jnp.transpose(W1, (1, 0, 2)).reshape(D, EH).astype(jnp.float32)
    b1_flat = b1.reshape(1, EH).astype(jnp.float32)                     # (1, E*H)

    # Block-diagonal second layer: rows [e*H:(e+1)*H], column e hold W2[e].
    w2_cols = W2.reshape(E, H).astype(jnp.float32)                      # (E, H)
    eye = jnp.eye(E, dtype=jnp.float32)
    W2_bd = (w2_cols[:, :, None] * eye[:, None, :]).reshape(EH, E)      # (E*H, E)
    b2_flat = b2.reshape(1, E).astype(jnp.float32)                      # (1, E)

    # Materialize now so no forward call pays for the re-layout.
    W1_flat, b1_flat, W2_bd, b2_flat = jax.block_until_ready(
        (W1_flat, b1_flat, W2_bd, b2_flat))
    return dict(W1_flat=W1_flat, b1=b1_flat, W2_bd=W2_bd, b2=b2_flat,
                E=E, D=D, H=H)


def _pick_batch_tile(B, max_tile=512):
    """Largest batch tile <= max_tile that is a multiple of 8 and divides B."""
    if B <= max_tile:
        return B                                # full-extent block (always legal)
    t = max_tile - (max_tile % 8)
    while t >= 8:
        if B % t == 0:
            return t
        t -= 8
    return B                                    # fallback: single full tile


# ---------------------------------------------------------------------------
# Forward (the per-step hot path)
# ---------------------------------------------------------------------------
def adv_classifier_filter_forward(state, action, prepared, step_num,
                                  conf_sched, unct_sched, *, b_tile=None):
    """Pallas implementation of AdvClassifierFilter.forward (the mask)."""
    E, D, H = prepared["E"], prepared["D"], prepared["H"]
    EH = E * H

    # TODO(synk): for very large B, feed state/action as bf16 into the dots
    # (keep bias/sigmoid/stats in f32) to halve the batch-scaling DMA bytes.
    state = state.astype(jnp.float32)
    action = action.astype(jnp.float32)
    B, S = state.shape
    A = action.shape[1]
    assert S + A == D

    if b_tile is None:
        b_tile = _pick_batch_tile(B)
    assert B % b_tile == 0 and (b_tile % 8 == 0 or b_tile == B)
    n_tiles = B // b_tile

    # Schedules: host-side Python, exactly as in the PyTorch module.
    min_conf = float(conf_sched(step_num))
    max_unct = float(unct_sched(step_num))
    # var >= max_unct**2 is only equivalent to std >= max_unct for max_unct >= 0.
    assert max_unct >= 0.0, "max_unct schedule must stay non-negative"
    sched = jnp.array([min_conf, max_unct * max_unct], dtype=jnp.float32)

    grid_spec = pltpu.PrefetchScalarGridSpec(
        num_scalar_prefetch=1,
        grid=(n_tiles,),
        in_specs=[
            pl.BlockSpec((b_tile, S), lambda i, sched: (i, 0)),   # state tile
            pl.BlockSpec((b_tile, A), lambda i, sched: (i, 0)),   # action tile
            pl.BlockSpec((D, EH), lambda i, sched: (0, 0)),       # W1 (resident)
            pl.BlockSpec((1, EH), lambda i, sched: (0, 0)),       # b1 (resident)
            pl.BlockSpec((EH, E), lambda i, sched: (0, 0)),       # W2 block-diag
            pl.BlockSpec((1, E), lambda i, sched: (0, 0)),        # b2 (resident)
        ],
        out_specs=pl.BlockSpec((b_tile, 1), lambda i, sched: (i, 0)),
    )

    mask_2d = pl.pallas_call(
        functools.partial(_adv_filter_kernel, E),
        out_shape=jax.ShapeDtypeStruct((B, 1), jnp.float32),
        grid_spec=grid_spec,
        compiler_params=pltpu.CompilerParams(
            dimension_semantics=("parallel",)),   # shards batch tiles on v7x 2xTC
    )(sched, state, action, prepared["W1_flat"], prepared["b1"],
      prepared["W2_bd"], prepared["b2"])

    # TODO(synk): consume the (B, 1) mask directly downstream to drop this
    # (near-free) reshape/squeeze.
    return mask_2d.reshape(B)


# ---------------------------------------------------------------------------
# Pure-JAX reference (mirrors the PyTorch forward exactly)
# ---------------------------------------------------------------------------
def reference_forward(state, action, params, min_conf, max_unct):
    W1, b1, W2, b2 = params
    x = jnp.concatenate([state, action], axis=-1).astype(jnp.float32)
    h = jnp.maximum(jnp.einsum("bd,edh->ebh", x, W1) + b1, 0.0)   # (E,B,H)
    logits = jnp.einsum("ebh,eho->ebo", h, W2) + b2               # (E,B,1)
    preds = jax.nn.sigmoid(logits)
    mean = preds.mean(axis=0)
    std = preds.std(axis=0, ddof=1)                               # torch unbiased
    mask = jnp.where(mean >= min_conf, 1.0, 0.0)
    mask = jnp.where(std >= max_unct, 0.0, mask)
    return mask[:, 0]


# ---------------------------------------------------------------------------
if __name__ == "__main__":
    # Small shapes consistent with the module's forward(s, a, step_num).
    B, S, A, H, E = 8, 12, 4, 32, 4
    D = S + A
    step_num = 100_000

    key = jax.random.PRNGKey(0)
    ks = jax.random.split(key, 8)
    state = jax.random.normal(ks[0], (B, S), jnp.float32)
    action = jax.random.normal(ks[1], (B, A), jnp.float32)

    # Deterministic synthetic "ensemble classifier" parameters.
    W1 = jax.random.normal(ks[2], (E, D, H), jnp.float32) / jnp.sqrt(D)
    b1 = 0.1 * jax.random.normal(ks[3], (E, 1, H), jnp.float32)
    W2 = jax.random.normal(ks[4], (E, H, 1), jnp.float32) / jnp.sqrt(H)
    b2 = 0.1 * jax.random.normal(ks[5], (E, 1, 1), jnp.float32)
    params = (W1, b1, W2, b2)

    # Schedules exactly as in AdvClassifierFilter.__init__ defaults.
    unct_sched = get_linear_schedule(1.0, 0.05, 375000)
    conf_sched = get_linear_schedule(0.01, 0.9, 375000)

    # One-time weight re-layout (hoisted out of the per-step hot path).
    prepared = prepare_adv_filter_params(params)

    # --- small single-tile case -------------------------------------------
    mask = adv_classifier_filter_forward(
        state, action, prepared, step_num, conf_sched, unct_sched)
    mask = jax.block_until_ready(mask)

    ref = reference_forward(
        state, action, params, conf_sched(step_num), unct_sched(step_num))
    ref = jax.block_until_ready(ref)
    assert mask.shape == (B,)
    assert jnp.allclose(mask, ref), (mask, ref)

    # --- batch-tiled grid path (weights resident across grid steps) --------
    B2 = 64
    state2 = jax.random.normal(ks[6], (B2, S), jnp.float32)
    action2 = jax.random.normal(ks[7], (B2, A), jnp.float32)
    mask2 = adv_classifier_filter_forward(
        state2, action2, prepared, step_num, conf_sched, unct_sched, b_tile=16)
    mask2 = jax.block_until_ready(mask2)
    ref2 = jax.block_until_ready(reference_forward(
        state2, action2, params, conf_sched(step_num), unct_sched(step_num)))
    assert mask2.shape == (B2,)
    assert jnp.allclose(mask2, ref2), (mask2, ref2)

    print("KERNEL_OK")
</pallas_src>

<mosaic_0001>
module attributes {stable_mosaic.version = 11 : i64} {
  func.func @_adv_filter_kernel(%arg0: i32, %arg1: memref<2xf32, #tpu.memory_space<smem>>, %arg2: memref<8x12xf32, #tpu.memory_space<vmem>>, %arg3: memref<8x4xf32, #tpu.memory_space<vmem>>, %arg4: memref<16x128xf32, #tpu.memory_space<vmem>>, %arg5: memref<1x128xf32, #tpu.memory_space<vmem>>, %arg6: memref<128x4xf32, #tpu.memory_space<vmem>>, %arg7: memref<1x4xf32, #tpu.memory_space<vmem>>, %arg8: memref<8x1xf32, #tpu.memory_space<vmem>>) attributes {dimension_semantics = [#tpu.dimension_semantics<parallel>], iteration_bounds = array<i64: 1>, scalar_prefetch = 1 : i64, scratch_operands = 0 : i64, tpu.core_type = #tpu.core_type<tc>, window_params = [{transform_indices = @transform_0, window_bounds = array<i64: 8, 12>}, {transform_indices = @transform_1, window_bounds = array<i64: 8, 4>}, {pipeline_mode = #tpu.pipeline_mode<synchronous>, transform_indices = @transform_2, window_bounds = array<i64: 16, 128>}, {pipeline_mode = #tpu.pipeline_mode<synchronous>, transform_indices = @transform_3, window_bounds = array<i64: 1, 128>}, {pipeline_mode = #tpu.pipeline_mode<synchronous>, transform_indices = @transform_4, window_bounds = array<i64: 128, 4>}, {pipeline_mode = #tpu.pipeline_mode<synchronous>, transform_indices = @transform_5, window_bounds = array<i64: 1, 4>}, {transform_indices = @transform_6, window_bounds = array<i64: 8, 1>}]} {
    %c0 = arith.constant 0 : index
    %c0_0 = arith.constant 0 : index
    %0 = vector.load %arg2[%c0, %c0_0] : memref<8x12xf32, #tpu.memory_space<vmem>>, vector<8x12xf32>
    %c0_1 = arith.constant 0 : index
    %c0_2 = arith.constant 0 : index
    %1 = vector.load %arg3[%c0_1, %c0_2] : memref<8x4xf32, #tpu.memory_space<vmem>>, vector<8x4xf32>
    %2 = tpu.concatenate %0, %1 in 1 : vector<8x12xf32>, vector<8x4xf32> -> vector<8x16xf32>
    %c0_3 = arith.constant 0 : index
    %c0_4 = arith.constant 0 : index
    %3 = vector.load %arg4[%c0_3, %c0_4] : memref<16x128xf32, #tpu.memory_space<vmem>>, vector<16x128xf32>
    %cst = arith.constant dense<0.000000e+00> : vector<8x128xf32>
    %4 = tpu.matmul %2, %3, %cst {dimension_numbers = #tpu.dot_dimension_numbers<[1], [0], [0], [1], [0, 0, 1, 1], [], []>} : vector<8x16xf32>, vector<16x128xf32>, vector<8x128xf32> -> vector<8x128xf32>
    %c0_5 = arith.constant 0 : index
    %c0_6 = arith.constant 0 : index
    %5 = vector.load %arg5[%c0_5, %c0_6] : memref<1x128xf32, #tpu.memory_space<vmem>>, vector<1x128xf32>
    %6 = vector.broadcast %5 : vector<1x128xf32> to vector<8x128xf32>
    %7 = arith.addf %4, %6 : vector<8x128xf32>
    %cst_7 = arith.constant 0.000000e+00 : f32
    %8 = vector.broadcast %cst_7 : f32 to vector<8x128xf32>
    %9 = arith.maximumf %7, %8 : vector<8x128xf32>
    %c0_8 = arith.constant 0 : index
    %c0_9 = arith.constant 0 : index
    %10 = vector.load %arg6[%c0_8, %c0_9] : memref<128x4xf32, #tpu.memory_space<vmem>>, vector<128x4xf32>
    %cst_10 = arith.constant dense<0.000000e+00> : vector<8x4xf32>
    %11 = tpu.matmul %9, %10, %cst_10 {dimension_numbers = #tpu.dot_dimension_numbers<[1], [0], [0], [1], [0, 0, 1, 1], [], []>} : vector<8x128xf32>, vector<128x4xf32>, vector<8x4xf32> -> vector<8x4xf32>
    %c0_11 = arith.constant 0 : index
    %c0_12 = arith.constant 0 : index
    %12 = vector.load %arg7[%c0_11, %c0_12] : memref<1x4xf32, #tpu.memory_space<vmem>>, vector<1x4xf32>
    %13 = vector.broadcast %12 : vector<1x4xf32> to vector<8x4xf32>
    %14 = arith.addf %11, %13 : vector<8x4xf32>
    %15 = arith.negf %14 : vector<8x4xf32>
    %16 = math.exp %15 : vector<8x4xf32>
    %cst_13 = arith.constant 1.000000e+00 : f32
    %17 = vector.broadcast %cst_13 : f32 to vector<8x4xf32>
    %18 = arith.addf %17, %16 : vector<8x4xf32>
    %19 = arith.divf %17, %18 : vector<8x4xf32>
    %cst_14 = arith.constant dense<0.000000e+00> : vector<8xf32>
    %20 = vector.multi_reduction <add>, %19, %cst_14 [1] : vector<8x4xf32> to vector<8xf32>
    %21 = vector.shape_cast %20 : vector<8xf32> to vector<8x1xf32>
    %cst_15 = arith.constant 2.500000e-01 : f32
    %22 = vector.broadcast %cst_15 : f32 to vector<8x1xf32>
    %23 = arith.mulf %21, %22 : vector<8x1xf32>
    %24 = vector.broadcast %23 : vector<8x1xf32> to vector<8x4xf32>
    %25 = arith.subf %19, %24 : vector<8x4xf32>
    %26 = arith.mulf %25, %25 : vector<8x4xf32>
    %cst_16 = arith.constant dense<0.000000e+00> : vector<8xf32>
    %27 = vector.multi_reduction <add>, %26, %cst_16 [1] : vector<8x4xf32> to vector<8xf32>
    %28 = vector.shape_cast %27 : vector<8xf32> to vector<8x1xf32>
    %cst_17 = arith.constant 0.333333343 : f32
    %29 = vector.broadcast %cst_17 : f32 to vector<8x1xf32>
    %30 = arith.mulf %28, %29 : vector<8x1xf32>
    %c0_18 = arith.constant 0 : index
    %31 = memref.load %arg1[%c0_18] : memref<2xf32, #tpu.memory_space<smem>>
    %c1 = arith.constant 1 : index
    %32 = memref.load %arg1[%c1] : memref<2xf32, #tpu.memory_space<smem>>
    %33 = vector.broadcast %31 : f32 to vector<8x1xf32>
    %34 = arith.cmpf oge, %23, %33 : vector<8x1xf32>
    %cst_19 = arith.constant 1.000000e+00 : f32
    %cst_20 = arith.constant 0.000000e+00 : f32
    %35 = vector.broadcast %cst_19 : f32 to vector<8x1xf32>
    %36 = vector.broadcast %cst_20 : f32 to vector<8x1xf32>
    %37 = arith.select %34, %35, %36 : vector<8x1xi1>, vector<8x1xf32>
    %38 = vector.broadcast %32 : f32 to vector<8x1xf32>
    %39 = arith.cmpf oge, %30, %38 : vector<8x1xf32>
    %cst_21 = arith.constant 0.000000e+00 : f32
    %40 = vector.broadcast %cst_21 : f32 to vector<8x1xf32>
    %41 = arith.select %39, %40, %37 : vector<8x1xi1>, vector<8x1xf32>
    %c0_22 = arith.constant 0 : index
    %c0_23 = arith.constant 0 : index
    %42 = vector.load %arg8[%c0_22, %c0_23] : memref<8x1xf32, #tpu.memory_space<vmem>>, vector<8x1xf32>
    tpu.vector_store %arg8[%c0_22, %c0_23], %41 {strides = array<i32>} : memref<8x1xf32, #tpu.memory_space<vmem>>, vector<8x1xf32>,
    return
  }
  func.func @transform_0(%arg0: i32, %arg1: memref<2xf32, #tpu.memory_space<smem>>) -> (i32, i32) {
    %c0_i32 = arith.constant 0 : i32
    %c0_i32_0 = arith.constant 0 : i32
    return %arg0, %c0_i32 : i32, i32
  }
  func.func @transform_1(%arg0: i32, %arg1: memref<2xf32, #tpu.memory_space<smem>>) -> (i32, i32) {
    %c0_i32 = arith.constant 0 : i32
    %c0_i32_0 = arith.constant 0 : i32
    return %arg0, %c0_i32 : i32, i32
  }
  func.func @transform_2(%arg0: i32, %arg1: memref<2xf32, #tpu.memory_space<smem>>) -> (i32, i32) {
    %c0_i32 = arith.constant 0 : i32
    %c0_i32_0 = arith.constant 0 : i32
    %c0_i32_1 = arith.constant 0 : i32
    return %c0_i32, %c0_i32_0 : i32, i32
  }
  func.func @transform_3(%arg0: i32, %arg1: memref<2xf32, #tpu.memory_space<smem>>) -> (i32, i32) {
    %c0_i32 = arith.constant 0 : i32
    %c0_i32_0 = arith.constant 0 : i32
    %c0_i32_1 = arith.constant 0 : i32
    return %c0_i32, %c0_i32_0 : i32, i32
  }
  func.func @transform_4(%arg0: i32, %arg1: memref<2xf32, #tpu.memory_space<smem>>) -> (i32, i32) {
    %c0_i32 = arith.constant 0 : i32
    %c0_i32_0 = arith.constant 0 : i32
    %c0_i32_1 = arith.constant 0 : i32
    return %c0_i32, %c0_i32_0 : i32, i32
  }
  func.func @transform_5(%arg0: i32, %arg1: memref<2xf32, #tpu.memory_space<smem>>) -> (i32, i32) {
    %c0_i32 = arith.constant 0 : i32
    %c0_i32_0 = arith.constant 0 : i32
    %c0_i32_1 = arith.constant 0 : i32
    return %c0_i32, %c0_i32_0 : i32, i32
  }
  func.func @transform_6(%arg0: i32, %arg1: memref<2xf32, #tpu.memory_space<smem>>) -> (i32, i32) {
    %c0_i32 = arith.constant 0 : i32
    %c0_i32_0 = arith.constant 0 : i32
    return %arg0, %c0_i32 : i32, i32
  }
}

</mosaic_0001>

<llo_original>
// kernel: tpu_custom_call.1
$region0: #{tpu_custom_call.1}
  #allocation0 [shape = 'u32[]', space=smem, size = 0x4, offset = 0x4, fixed_abs, tag = 'smem constant byte address 0x4 - core index']
  #allocation1 [shape = 'u32[144,128]{1,0:T(1,128)}', space=vmem, size = 0x12000, scoped, tag = 'internal scratch']
  #allocation2 [shape = 's32[1]{0}', space=sflag, size = 0x4, scoped, tag = 'scoped memory for tpu_custom_call.1']
  #allocation3 [shape = 'u8[512]{0}', space=smem, size = 0x200, scoped, tag = 'prefetched SMEM operand 0']
  %s0 = inlined_call_operand.vmem [shape: f32[2], index: 0, kind: input, shape index: {}]
  %s1 = inlined_call_operand.vmem [shape: f32[8,12], index: 1, kind: input, shape index: {}]
  %s2 = inlined_call_operand.vmem [shape: f32[8,4], index: 2, kind: input, shape index: {}]
  %s3 = inlined_call_operand.vmem [shape: f32[16,128], index: 3, kind: input, shape index: {}]
  %s4 = inlined_call_operand.vmem [shape: f32[1,128], index: 4, kind: input, shape index: {}]
  %s5 = inlined_call_operand.vmem [shape: f32[128,4], index: 5, kind: input, shape index: {}]
  %s6 = inlined_call_operand.vmem [shape: f32[1,4], index: 6, kind: input, shape index: {}]
  %s7 = inlined_call_operand.vmem [shape: f32[8,1], index: 7, kind: output, shape index: {}]
  %s8 = sld [smem:[#allocation0]]
  $region34: #{tpu_custom_call.1} parent=0
    _
  %s10 = ssub.s32 1, %s8
  %s11 = scalar_select 0, %s10, %s8
  %s12 = sshll.u32 %s0, 4
  %s13 = int_to_ptr.vmem [resolvable:$true] %s12
  %15 = dma.vmem_to_smem %s13, 16, [#allocation3], [#allocation2]
  %16 = dma.done [#allocation2], 16
  %17 = sfence
  // Predicated region
  $region2: #{tpu_custom_call.1} parent=0 // pred_check
    _
  $region3: #{tpu_custom_call.1} parent=0 // pred_check_branch
    %19 = sbr.rel (0) target = $region5
  $region4: #{tpu_custom_call.1} parent=0 // pred_region
    _
  $region5: #{tpu_custom_call.1} parent=0 // pred_fallthru
    _
  // Predicated region
  $region6: #{tpu_custom_call.1} parent=0 // pred_check
    _
  $region7: #{tpu_custom_call.1} parent=0 // pred_check_branch
    %21 = sbr.rel (0) target = $region9
  $region8: #{tpu_custom_call.1} parent=0 // pred_region
    _
  $region9: #{tpu_custom_call.1} parent=0 // pred_fallthru
    _
  // Predicated region
  $region10: #{tpu_custom_call.1} parent=0 // pred_check
    _
  $region11: #{tpu_custom_call.1} parent=0 // pred_check_branch
    %23 = sbr.rel (0) target = $region13
  $region12: #{tpu_custom_call.1} parent=0 // pred_region
    _
  $region13: #{tpu_custom_call.1} parent=0 // pred_fallthru
    _
  // Predicated region
  $region14: #{tpu_custom_call.1} parent=0 // pred_check
    _
  $region15: #{tpu_custom_call.1} parent=0 // pred_check_branch
    %25 = sbr.rel (0) target = $region17
  $region16: #{tpu_custom_call.1} parent=0 // pred_region
    _
  $region17: #{tpu_custom_call.1} parent=0 // pred_fallthru
    _
  // Predicated region
  $region18: #{tpu_custom_call.1} parent=0 // pred_check
    _
  $region19: #{tpu_custom_call.1} parent=0 // pred_check_branch
    %27 = sbr.rel (0) target = $region21
  $region20: #{tpu_custom_call.1} parent=0 // pred_region
    _
  $region21: #{tpu_custom_call.1} parent=0 // pred_fallthru
    _
  // Predicated region
  $region22: #{tpu_custom_call.1} parent=0 // pred_check
    _
  $region23: #{tpu_custom_call.1} parent=0 // pred_check_branch
    %29 = sbr.rel (0) target = $region25
  $region24: #{tpu_custom_call.1} parent=0 // pred_region
    _
  $region25: #{tpu_custom_call.1} parent=0 // pred_fallthru
    _
  %v30 = vld [vmem:[%s1] sm:$0xff]
  %v31 = vld [vmem:[%s2] sm:$0xff]
  %33 = vrot.lane.b32.xlu0 %v31, 12
  %v34 = vpop.permute.xlu0 %33
  %vm36 = vcmask 97280
  %v37 = vsel %vm36, %v30, %v34
  %v38 = vld [vmem:[%s3] sm:$0xff]
  %v39 = vld [vmem:[%s3 + $0x8] sm:$0xff]
  %v40 = vld [vmem:[%s4] sm:$0x1]
  %v42 = vlaneseq
  %v43 = vshrl.u32 %v42, 7
  %v44 = vsub.s32 0, %v43
  %v45 = vrot.slane %v40, %v44
  %vm47 = vcmask 130048
  %v49 = vsel %vm47, %v37, 0
  %51 = vmatprep.subr.mxu0 0.0
  %52 = vmatpush1.msra.mxu0 %v38
  %53 = vmatprep.subr.mxu0 0.0
  %54 = vmatpush1.msra.mxu0 %v39
  %55 = vmatprep.subr.mxu0 0.0
  %56 = vmatpush1.msra.mxu0 0.0
  %57 = vmatprep.subr.mxu0 0.0
  %58 = vmatpush1.msra.mxu0 0.0
  %59 = vmatprep.subr.mxu0 0.0
  %60 = vmatpush1.msra.mxu0 0.0
  %61 = vmatprep.subr.mxu0 0.0
  %62 = vmatpush1.msra.mxu0 0.0
  %63 = vmatprep.subr.mxu0 0.0
  %64 = vmatpush1.msra.mxu0 0.0
  %65 = vmatprep.subr.mxu0 0.0
  %66 = vmatpush1.msra.mxu0 0.0
  %67 = vmatprep.subr.mxu0 0.0
  %68 = vmatpush1.msra.mxu0 0.0
  %69 = vmatprep.subr.mxu0 0.0
  %70 = vmatpush1.msra.mxu0 0.0
  %71 = vmatprep.subr.mxu0 0.0
  %72 = vmatpush1.msra.mxu0 0.0
  %73 = vmatprep.subr.mxu0 0.0
  %74 = vmatpush1.msra.mxu0 0.0
  %75 = vmatprep.subr.mxu0 0.0
  %76 = vmatpush1.msra.mxu0 0.0
  %77 = vmatprep.subr.mxu0 0.0
  %78 = vmatpush1.msra.mxu0 0.0
  %79 = vmatprep.subr.mxu0 0.0
  %80 = vmatpush1.msra.mxu0 0.0
  %81 = vmatprep.subr.mxu0 0.0
  %82 = vmatpush1.msra.mxu0 0.0
  %83 = vmatprep.subr.mxu0 0.0
  %84 = vmatpush1.msra.mxu0 0.0
  %85 = vmatprep.subr.mxu0 0.0
  %86 = vmatpush1.msra.mxu0 0.0
  %87 = vmatprep.subr.mxu0 0.0
  %88 = vmatpush1.msra.mxu0 0.0
  %89 = vmatprep.subr.mxu0 0.0
  %90 = vmatpush1.msra.mxu0 0.0
  %91 = vmatprep.subr.mxu0 0.0
  %92 = vmatpush1.msra.mxu0 0.0
  %93 = vmatprep.subr.mxu0 0.0
  %94 = vmatpush1.msra.mxu0 0.0
  %95 = vmatprep.subr.mxu0 0.0
  %96 = vmatpush1.msra.mxu0 0.0
  %97 = vmatprep.subr.mxu0 0.0
  %98 = vmatpush1.msra.mxu0 0.0
  %99 = vmatprep.subr.mxu0 0.0
  %100 = vmatpush1.msra.mxu0 0.0
  %101 = vmatprep.subr.mxu0 0.0
  %102 = vmatpush1.msra.mxu0 0.0
  %103 = vmatprep.subr.mxu0 0.0
  %104 = vmatpush1.msra.mxu0 0.0
  %105 = vmatprep.subr.mxu0 0.0
  %106 = vmatpush1.msra.mxu0 0.0
  %107 = vmatprep.subr.mxu0 0.0
  %108 = vmatpush1.msra.mxu0 0.0
  %109 = vmatprep.subr.mxu0 0.0
  %110 = vmatpush1.msra.mxu0 0.0
  %111 = vmatprep.subr.mxu0 0.0
  %112 = vmatpush1.msra.mxu0 0.0
  %113 = vmatprep.subr.mxu0 0.0
  %114 = vmatpush1.msra.mxu0 0.0
  %115 = vmatprep.mubr.f32.mxu0 0.0
  %116 = vmatmul.mubr.f32.gmra.mrb[0].mxu0 %v49
  %v117 = vpop.f32.mrb[0].mxu0
  %v118 = vadd.f32 %v45, %v117
  %v119 = vpop.f32.mrb[0].mxu0
  %120 = vdwg.mxu0
  %v121 = vmax.f32 %v118, 0.0
  %v122 = vld [vmem:[%s5] sm:$0xff]
  %v123 = vld [vmem:[%s5 + $0x8] sm:$0xff]
  %v124 = vld [vmem:[%s5 + $0x10] sm:$0xff]
  %v125 = vld [vmem:[%s5 + $0x18] sm:$0xff]
  %v126 = vld [vmem:[%s5 + $0x20] sm:$0xff]
  %v127 = vld [vmem:[%s5 + $0x28] sm:$0xff]
  %v128 = vld [vmem:[%s5 + $0x30] sm:$0xff]
  %v129 = vld [vmem:[%s5 + $0x38] sm:$0xff]
  %v130 = vld [vmem:[%s5 + $0x40] sm:$0xff]
  %v131 = vld [vmem:[%s5 + $0x48] sm:$0xff]
  %v132 = vld [vmem:[%s5 + $0x50] sm:$0xff]
  %v133 = vld [vmem:[%s5 + $0x58] sm:$0xff]
  %v134 = vld [vmem:[%s5 + $0x60] sm:$0xff]
  %v135 = vld [vmem:[%s5 + $0x68] sm:$0xff]
  %v136 = vld [vmem:[%s5 + $0x70] sm:$0xff]
  %v137 = vld [vmem:[%s5 + $0x78] sm:$0xff]
  %v138 = vld [vmem:[%s6] sm:$0x1]
  %v140 = vlaneseq
  %v141 = vshrl.u32 %v140, 7
  %v142 = vsub.s32 0, %v141
  %v143 = vrot.slane %v138, %v142
  %145 = vmatprep.subr.mxu0 0.0
  %146 = vmatpush1.msra.mxu0 %v122
  %147 = vmatprep.subr.mxu0 0.0
  %148 = vmatpush1.msra.mxu0 %v123
  %149 = vmatprep.subr.mxu0 0.0
  %150 = vmatpush1.msra.mxu0 %v124
  %151 = vmatprep.subr.mxu0 0.0
  %152 = vmatpush1.msra.mxu0 %v125
  %153 = vmatprep.subr.mxu0 0.0
  %154 = vmatpush1.msra.mxu0 %v126
  %155 = vmatprep.subr.mxu0 0.0
  %156 = vmatpush1.msra.mxu0 %v127
  %157 = vmatprep.subr.mxu0 0.0
  %158 = vmatpush1.msra.mxu0 %v128
  %159 = vmatprep.subr.mxu0 0.0
  %160 = vmatpush1.msra.mxu0 %v129
  %161 = vmatprep.subr.mxu0 0.0
  %162 = vmatpush1.msra.mxu0 %v130
  %163 = vmatprep.subr.mxu0 0.0
  %164 = vmatpush1.msra.mxu0 %v131
  %165 = vmatprep.subr.mxu0 0.0
  %166 = vmatpush1.msra.mxu0 %v132
  %167 = vmatprep.subr.mxu0 0.0
  %168 = vmatpush1.msra.mxu0 %v133
  %169 = vmatprep.subr.mxu0 0.0
  %170 = vmatpush1.msra.mxu0 %v134
  %171 = vmatprep.subr.mxu0 0.0
  %172 = vmatpush1.msra.mxu0 %v135
  %173 = vmatprep.subr.mxu0 0.0
  %174 = vmatpush1.msra.mxu0 %v136
  %175 = vmatprep.subr.mxu0 0.0
  %176 = vmatpush1.msra.mxu0 %v137
  %177 = vmatprep.subr.mxu0 0.0
  %178 = vmatpush1.msra.mxu0 0.0
  %179 = vmatprep.subr.mxu0 0.0
  %180 = vmatpush1.msra.mxu0 0.0
  %181 = vmatprep.subr.mxu0 0.0
  %182 = vmatpush1.msra.mxu0 0.0
  %183 = vmatprep.subr.mxu0 0.0
  %184 = vmatpush1.msra.mxu0 0.0
  %185 = vmatprep.subr.mxu0 0.0
  %186 = vmatpush1.msra.mxu0 0.0
  %187 = vmatprep.subr.mxu0 0.0
  %188 = vmatpush1.msra.mxu0 0.0
  %189 = vmatprep.subr.mxu0 0.0
  %190 = vmatpush1.msra.mxu0 0.0
  %191 = vmatprep.subr.mxu0 0.0
  %192 = vmatpush1.msra.mxu0 0.0
  %193 = vmatprep.subr.mxu0 0.0
  %194 = vmatpush1.msra.mxu0 0.0
  %195 = vmatprep.subr.mxu0 0.0
  %196 = vmatpush1.msra.mxu0 0.0
  %197 = vmatprep.subr.mxu0 0.0
  %198 = vmatpush1.msra.mxu0 0.0
  %199 = vmatprep.subr.mxu0 0.0
  %200 = vmatpush1.msra.mxu0 0.0
  %201 = vmatprep.subr.mxu0 0.0
  %202 = vmatpush1.msra.mxu0 0.0
  %203 = vmatprep.subr.mxu0 0.0
  %204 = vmatpush1.msra.mxu0 0.0
  %205 = vmatprep.subr.mxu0 0.0
  %206 = vmatpush1.msra.mxu0 0.0
  %207 = vmatprep.subr.mxu0 0.0
  %208 = vmatpush1.msra.mxu0 0.0
  %209 = vmatprep.mubr.f32.mxu0 0.0
  %210 = vmatmul.mubr.f32.gmra.mrb[0].mxu0 %v121
  %v211 = vpop.f32.mrb[0].mxu0
  %v212 = vadd.f32 %v143, %v211
  %v213 = vpop.f32.mrb[0].mxu0
  %214 = vdwg.mxu0
  %v215 = vxor.u32 %v212, 2147483648
  %v216 = vmul.f32 %v215, 1.442695
  %v217 = vpow.pop %v216
  %v218 = vadd.f32 %v217, 1.0
  %v219 = vrcp.pop %v218
  %v220 = vmul.f32 1.0, %v219
  %vm221 = vcmask 31744
  %v222 = vsel %vm221, %v220, 0.0
  %223 = vadd.xlane.f32.xlu0 %v222
  %v224 = vpop.xlane.xlu0 %223
  %v225 = vmul.f32 %v224, 0.25
  %v226 = vsub.f32 %v220, %v225
  %v227 = vmul.f32 %v226, %v226
  %v228 = vsel %vm221, %v227, 0.0
  %229 = vadd.xlane.f32.xlu0 %v228
  %v230 = vpop.xlane.xlu0 %229
  %v231 = vmul.f32 %v230, 0.33333334
  %s232 = sld [smem:[#allocation3]]
  %s233 = sld [smem:[#allocation3 + $0x1]]
  %v234 = vstv %s232
  %vm235 = vcmp.ge.f32.partialorder %v225, %v234
  %v236 = vsel %vm235, 1.0, 0.0
  %v237 = vstv %s233
  %vm238 = vcmp.ge.f32.partialorder %v231, %v237
  %v239 = vsel %vm238, 0.0, %v236
  %vm240 = vcmask 7168
  %241 = vst.msk [vmem:[%s7] sm:$0xff] %vm240, %v239
  // Predicated region
  $region26: #{tpu_custom_call.1} parent=0 // pred_check
    _
  $region27: #{tpu_custom_call.1} parent=0 // pred_check_branch
    %243 = sbr.rel (0) target = $region29
  $region28: #{tpu_custom_call.1} parent=0 // pred_region
    _
  $region29: #{tpu_custom_call.1} parent=0 // pred_fallthru
    _
  // Predicated region
  $region30: #{tpu_custom_call.1} parent=0 // pred_check
    _
  $region31: #{tpu_custom_call.1} parent=0 // pred_check_branch
    %245 = sbr.rel (0) target = $region33
  $region32: #{tpu_custom_call.1} parent=0 // pred_region
    _
  $region33: #{tpu_custom_call.1} parent=0 // pred_fallthru
    _

</llo_original>
